<compile_context>
chip_gen: v6e
topology: v6e:2x2x1
jax: 0.10.0
libtpu: 0.0.40
codegen_flags: <defaults>
</compile_context>

<pallas_src>
import functools

import jax
import jax.numpy as jnp
from jax.experimental import pallas as pl
from jax.experimental.pallas import tpu as pltpu

_CPAD = 128          # padded class (lane) dimension used for the MXU / softmax
_NEG_BIG = -1e30     # bias padding; exp(_NEG_BIG - m) underflows to exactly 0 in f32


def _round_up(x, m):
    return ((x + m - 1) // m) * m


def _cdiv(a, b):
    return (a + b - 1) // b


def _logreg_kernel(x_ref, wt_ref, b_ref, o_ref):
    # x_ref : (TB, D)      activations (f32)
    # wt_ref: (D, 128)     pre-transposed, class-padded weights (VMEM-resident)
    # b_ref : (1, 128)     bias, padded with a large negative value
    # o_ref : (TB, C)      only the real class lanes are stored to HBM
    x = x_ref[...]
    logits = jnp.dot(x, wt_ref[...], preferred_element_type=jnp.float32) + b_ref[...]

    # Numerically stable softmax over the 128-lane padded class axis.  Padded
    # classes have logits ~ -1e30 -> exp underflows to exactly 0, so they do
    # not perturb the denominator.
    m = jnp.max(logits, axis=1, keepdims=True)
    e = jnp.exp(logits - m)
    denom = jnp.sum(e, axis=1, keepdims=True)

    c = o_ref.shape[-1]
    # Exact normalization (VALU divide on (TB, C) only); kernel is HBM-bound,
    # so this costs nothing and keeps row sums == 1 to f32 roundoff.
    o_ref[...] = (e[:, :c] / denom).astype(o_ref.dtype)


@functools.partial(jax.jit, static_argnames=("block_batch",))
def logistic_regression_forward(x, w, b, *, block_batch=4096):
    """x: (B, D) f32, w: (C, D) f32, b: (C,) f32 -> softmax(x @ w.T + b), shape (B, C)."""
    B, D = x.shape
    C = w.shape[0]
    assert C <= _CPAD

    # --- wrapper-side layout prep (cheap, one-off) --------------------------
    x = x.astype(jnp.float32)
    wt = jnp.zeros((D, _CPAD), jnp.float32).at[:, :C].set(w.T.astype(jnp.float32))
    bp = jnp.full((1, _CPAD), _NEG_BIG, jnp.float32).at[0, :C].set(
        b.astype(jnp.float32))

    # --- batch tile size -----------------------------------------------------
    # Cap TB so the double-buffered (TB, D) f32 x-tile stays <= ~8 MiB (only
    # matters at very large D), then split mid-size batches into >= 2 tiles so
    # both v7x TensorCores get work.
    tb_cap = max(8, (((8 << 20) // (2 * D * 4)) // 8) * 8)
    TB = max(8, (min(block_batch, tb_cap) // 8) * 8)
    if B < 2 * TB:
        TB = max(8, _round_up(_cdiv(B, 2), 8))
    grid = (_cdiv(B, TB),)

    # Resident weight / bias: constant index_map -> stays in VMEM across the
    # grid.  Single-buffer it when it is large (it never changes), so it does
    # not double-count against v7x's 64 MiB VMEM.  Inert at small D.
    if 2 * D * _CPAD * 4 >= (8 << 20):
        w_spec = pl.BlockSpec((D, _CPAD), lambda i: (0, 0),
                              pipeline_mode=pl.Buffered(1))
        b_spec = pl.BlockSpec((1, _CPAD), lambda i: (0, 0),
                              pipeline_mode=pl.Buffered(1))
    else:
        w_spec = pl.BlockSpec((D, _CPAD), lambda i: (0, 0))
        b_spec = pl.BlockSpec((1, _CPAD), lambda i: (0, 0))

    out = pl.pallas_call(
        _logreg_kernel,
        out_shape=jax.ShapeDtypeStruct((B, C), jnp.float32),
        grid_spec=pltpu.PrefetchScalarGridSpec(
            num_scalar_prefetch=0,
            grid=grid,
            in_specs=[
                pl.BlockSpec((TB, D), lambda i: (i, 0)),   # streamed per tile
                w_spec,                                     # VMEM-resident
                b_spec,                                     # VMEM-resident
            ],
            out_specs=pl.BlockSpec((TB, C), lambda i: (i, 0)),
        ),
        compiler_params=pltpu.CompilerParams(
            dimension_semantics=("parallel",),   # shards batch across v7x's 2 TCs
            vmem_limit_bytes=32 * 1024 * 1024,
        ),
    )(x, wt, bp)

    return out


def _reference(x, w, b):
    logits = x @ w.T + b
    return jax.nn.softmax(logits, axis=1)


if __name__ == "__main__":
    key = jax.random.PRNGKey(0)
    k_x, k_w, k_b = jax.random.split(key, 3)

    batch = 8
    input_dim = 32
    num_classes = 3

    x = jax.random.normal(k_x, (batch, input_dim), dtype=jnp.float32)

    # Deterministic parameter init mimicking nn.Linear's uniform(-1/sqrt(D), 1/sqrt(D))
    bound = 1.0 / (input_dim ** 0.5)
    w = jax.random.uniform(k_w, (num_classes, input_dim), dtype=jnp.float32,
                           minval=-bound, maxval=bound)
    b = jax.random.uniform(k_b, (num_classes,), dtype=jnp.float32,
                           minval=-bound, maxval=bound)

    out = logistic_regression_forward(x, w, b)
    out = jax.block_until_ready(out)

    ref = _reference(x, w, b)
    assert out.shape == (batch, num_classes)
    assert jnp.allclose(out, ref, atol=1e-3, rtol=1e-3)
    # Exact divide in the kernel -> rows sum to 1 within f32 roundoff.
    assert jnp.allclose(jnp.sum(out, axis=1), 1.0, atol=1e-4)

    print("KERNEL_OK")
</pallas_src>

<mosaic_0001>
module attributes {stable_mosaic.version = 11 : i64} {
  func.func @_logreg_kernel(%arg0: i32, %arg1: memref<8x32xf32, #tpu.memory_space<vmem>>, %arg2: memref<32x128xf32, #tpu.memory_space<vmem>>, %arg3: memref<1x128xf32, #tpu.memory_space<vmem>>, %arg4: memref<8x3xf32, #tpu.memory_space<vmem>>) attributes {dimension_semantics = [#tpu.dimension_semantics<parallel>], iteration_bounds = array<i64: 1>, scalar_prefetch = 0 : i64, scratch_operands = 0 : i64, tpu.core_type = #tpu.core_type<tc>, window_params = [{transform_indices = @transform_0, window_bounds = array<i64: 8, 32>}, {pipeline_mode = #tpu.pipeline_mode<synchronous>, transform_indices = @transform_1, window_bounds = array<i64: 32, 128>}, {pipeline_mode = #tpu.pipeline_mode<synchronous>, transform_indices = @transform_2, window_bounds = array<i64: 1, 128>}, {transform_indices = @transform_3, window_bounds = array<i64: 8, 3>}]} {
    %c0 = arith.constant 0 : index
    %c0_0 = arith.constant 0 : index
    %0 = vector.load %arg1[%c0, %c0_0] : memref<8x32xf32, #tpu.memory_space<vmem>>, vector<8x32xf32>
    %c0_1 = arith.constant 0 : index
    %c0_2 = arith.constant 0 : index
    %1 = vector.load %arg2[%c0_1, %c0_2] : memref<32x128xf32, #tpu.memory_space<vmem>>, vector<32x128xf32>
    %cst = arith.constant dense<0.000000e+00> : vector<8x128xf32>
    %2 = tpu.matmul %0, %1, %cst {dimension_numbers = #tpu.dot_dimension_numbers<[1], [0], [0], [1], [0, 0, 1, 1], [], []>} : vector<8x32xf32>, vector<32x128xf32>, vector<8x128xf32> -> vector<8x128xf32>
    %c0_3 = arith.constant 0 : index
    %c0_4 = arith.constant 0 : index
    %3 = vector.load %arg3[%c0_3, %c0_4] : memref<1x128xf32, #tpu.memory_space<vmem>>, vector<1x128xf32>
    %4 = vector.broadcast %3 : vector<1x128xf32> to vector<8x128xf32>
    %5 = arith.addf %2, %4 : vector<8x128xf32>
    %cst_5 = arith.constant dense<0xFF800000> : vector<8xf32>
    %6 = vector.multi_reduction <maximumf>, %5, %cst_5 [1] : vector<8x128xf32> to vector<8xf32>
    %7 = vector.shape_cast %6 : vector<8xf32> to vector<8x1xf32>
    %8 = vector.broadcast %7 : vector<8x1xf32> to vector<8x128xf32>
    %9 = arith.subf %5, %8 : vector<8x128xf32>
    %10 = math.exp %9 : vector<8x128xf32>
    %cst_6 = arith.constant dense<0.000000e+00> : vector<8xf32>
    %11 = vector.multi_reduction <add>, %10, %cst_6 [1] : vector<8x128xf32> to vector<8xf32>
    %12 = vector.shape_cast %11 : vector<8xf32> to vector<8x1xf32>
    %13 = vector.extract_strided_slice %10 {offsets = [0, 0], sizes = [8, 3], strides = [1, 1]} : vector<8x128xf32> to vector<8x3xf32>
    %14 = vector.broadcast %12 : vector<8x1xf32> to vector<8x3xf32>
    %15 = arith.divf %13, %14 : vector<8x3xf32>
    %c0_7 = arith.constant 0 : index
    %c0_8 = arith.constant 0 : index
    %16 = vector.load %arg4[%c0_7, %c0_8] : memref<8x3xf32, #tpu.memory_space<vmem>>, vector<8x3xf32>
    tpu.vector_store %arg4[%c0_7, %c0_8], %15 {strides = array<i32>} : memref<8x3xf32, #tpu.memory_space<vmem>>, vector<8x3xf32>,
    return
  }
  func.func @transform_0(%arg0: i32) -> (i32, i32) {
    %c0_i32 = arith.constant 0 : i32
    %c0_i32_0 = arith.constant 0 : i32
    return %arg0, %c0_i32 : i32, i32
  }
  func.func @transform_1(%arg0: i32) -> (i32, i32) {
    %c0_i32 = arith.constant 0 : i32
    %c0_i32_0 = arith.constant 0 : i32
    %c0_i32_1 = arith.constant 0 : i32
    return %c0_i32, %c0_i32_0 : i32, i32
  }
  func.func @transform_2(%arg0: i32) -> (i32, i32) {
    %c0_i32 = arith.constant 0 : i32
    %c0_i32_0 = arith.constant 0 : i32
    %c0_i32_1 = arith.constant 0 : i32
    return %c0_i32, %c0_i32_0 : i32, i32
  }
  func.func @transform_3(%arg0: i32) -> (i32, i32) {
    %c0_i32 = arith.constant 0 : i32
    %c0_i32_0 = arith.constant 0 : i32
    return %arg0, %c0_i32 : i32, i32
  }
}

</mosaic_0001>

<llo_original>
// kernel: logistic_regression_forward.1
$region0: #{logistic_regression_forward.1}
  #allocation0 [shape = 'u32[]', space=smem, size = 0x4, offset = 0x4, fixed_abs, tag = 'smem constant byte address 0x4 - core index']
  #allocation1 [shape = 'u32[144,128]{1,0:T(1,128)}', space=vmem, size = 0x12000, scoped, tag = 'internal scratch']
  %s0 = inlined_call_operand.vmem [shape: f32[8,32], index: 0, kind: input, shape index: {}]
  %s1 = inlined_call_operand.vmem [shape: f32[32,128], index: 1, kind: input, shape index: {}]
  %s2 = inlined_call_operand.vmem [shape: f32[1,128], index: 2, kind: input, shape index: {}]
  %s3 = inlined_call_operand.vmem [shape: f32[8,3], index: 3, kind: output, shape index: {}]
  %s4 = sld [smem:[#allocation0]]
  $region22: #{logistic_regression_forward.1} parent=0
    _
  %s6 = ssub.s32 1, %s4
  %s7 = scalar_select 0, %s6, %s4
  // Predicated region
  $region2: #{logistic_regression_forward.1} parent=0 // pred_check
    _
  $region3: #{logistic_regression_forward.1} parent=0 // pred_check_branch
    %9 = sbr.rel (0) target = $region5
  $region4: #{logistic_regression_forward.1} parent=0 // pred_region
    _
  $region5: #{logistic_regression_forward.1} parent=0 // pred_fallthru
    _
  // Predicated region
  $region6: #{logistic_regression_forward.1} parent=0 // pred_check
    _
  $region7: #{logistic_regression_forward.1} parent=0 // pred_check_branch
    %11 = sbr.rel (0) target = $region9
  $region8: #{logistic_regression_forward.1} parent=0 // pred_region
    _
  $region9: #{logistic_regression_forward.1} parent=0 // pred_fallthru
    _
  // Predicated region
  $region10: #{logistic_regression_forward.1} parent=0 // pred_check
    _
  $region11: #{logistic_regression_forward.1} parent=0 // pred_check_branch
    %13 = sbr.rel (0) target = $region13
  $region12: #{logistic_regression_forward.1} parent=0 // pred_region
    _
  $region13: #{logistic_regression_forward.1} parent=0 // pred_fallthru
    _
  %v14 = vld [vmem:[%s0] sm:$0xff]
  %v15 = vld [vmem:[%s1] sm:$0xff]
  %v16 = vld [vmem:[%s1 + $0x8] sm:$0xff]
  %v17 = vld [vmem:[%s1 + $0x10] sm:$0xff]
  %v18 = vld [vmem:[%s1 + $0x18] sm:$0xff]
  %v19 = vld [vmem:[%s2] sm:$0x1]
  %v21 = vlaneseq
  %v22 = vshrl.u32 %v21, 7
  %v23 = vsub.s32 0, %v22
  %v24 = vrot.slane %v19, %v23
  %vm26 = vcmask 261120
  %v28 = vsel %vm26, %v14, 0
  %30 = vmatprep.subr.mxu0 0.0
  %31 = vmatpush1.msra.mxu0 0.0
  %32 = vmatprep.subr.mxu0 0.0
  %33 = vmatpush1.msra.mxu0 0.0
  %34 = vmatprep.subr.mxu0 0.0
  %35 = vmatpush1.msra.mxu0 0.0
  %36 = vmatprep.subr.mxu0 0.0
  %37 = vmatpush1.msra.mxu0 0.0
  %38 = vmatprep.subr.mxu0 0.0
  %39 = vmatpush1.msra.mxu0 0.0
  %40 = vmatprep.subr.mxu0 0.0
  %41 = vmatpush1.msra.mxu0 0.0
  %42 = vmatprep.subr.mxu0 0.0
  %43 = vmatpush1.msra.mxu0 0.0
  %44 = vmatprep.subr.mxu0 0.0
  %45 = vmatpush1.msra.mxu0 0.0
  %46 = vmatprep.subr.mxu0 0.0
  %47 = vmatpush1.msra.mxu0 0.0
  %48 = vmatprep.subr.mxu0 0.0
  %49 = vmatpush1.msra.mxu0 0.0
  %50 = vmatprep.subr.mxu0 0.0
  %51 = vmatpush1.msra.mxu0 0.0
  %52 = vmatprep.subr.mxu0 0.0
  %53 = vmatpush1.msra.mxu0 0.0
  %54 = vmatprep.subr.mxu0 0.0
  %55 = vmatpush1.msra.mxu0 %v18
  %56 = vmatprep.subr.mxu0 0.0
  %57 = vmatpush1.msra.mxu0 %v17
  %58 = vmatprep.subr.mxu0 0.0
  %59 = vmatpush1.msra.mxu0 %v16
  %60 = vmatprep.subr.mxu0 0.0
  %61 = vmatpush1.msra.mxu0 %v15
  %62 = vmatprep.subr.mxu0 0.0
  %63 = vmatpush2.msra.mxu0 0.0
  %64 = vmatprep.subr.mxu0 0.0
  %65 = vmatpush2.msra.mxu0 0.0
  %66 = vmatprep.subr.mxu0 0.0
  %67 = vmatpush2.msra.mxu0 0.0
  %68 = vmatprep.subr.mxu0 0.0
  %69 = vmatpush2.msra.mxu0 0.0
  %70 = vmatprep.subr.mxu0 0.0
  %71 = vmatpush2.msra.mxu0 0.0
  %72 = vmatprep.subr.mxu0 0.0
  %73 = vmatpush2.msra.mxu0 0.0
  %74 = vmatprep.subr.mxu0 0.0
  %75 = vmatpush2.msra.mxu0 0.0
  %76 = vmatprep.subr.mxu0 0.0
  %77 = vmatpush2.msra.mxu0 0.0
  %78 = vmatprep.subr.mxu0 0.0
  %79 = vmatpush2.msra.mxu0 0.0
  %80 = vmatprep.subr.mxu0 0.0
  %81 = vmatpush2.msra.mxu0 0.0
  %82 = vmatprep.subr.mxu0 0.0
  %83 = vmatpush2.msra.mxu0 0.0
  %84 = vmatprep.subr.mxu0 0.0
  %85 = vmatpush2.msra.mxu0 0.0
  %86 = vmatprep.subr.mxu0 0.0
  %87 = vmatpush2.msra.mxu0 0.0
  %88 = vmatprep.subr.mxu0 0.0
  %89 = vmatpush2.msra.mxu0 0.0
  %90 = vmatprep.subr.mxu0 0.0
  %91 = vmatpush2.msra.mxu0 0.0
  %92 = vmatprep.subr.mxu0 0.0
  %93 = vmatpush2.msra.mxu0 0.0
  %94 = vmatprep.mubr.f32.mxu0 0.0
  %95 = vmatmul.mubr.f32.gmra.mxu0 %v28
  %v96 = vpop.f32.mrf.mxu0
  %v97 = vadd.f32 %v24, %v96
  %v98 = vpop.f32.mrf.mxu0
  %99 = vdwg.mxu0
  %100 = vmax.xlane.f32.xlu0 %v97
  %v101 = vpop.xlane.xlu0 %100
  %v102 = vsub.f32 %v97, %v101
  %v103 = vmul.f32 %v102, 1.442695
  %v104 = vpow.pop %v103
  %105 = vadd.xlane.f32.xlu0 %v104
  %v106 = vpop.xlane.xlu0 %105
  %v107 = vrcp.pop %v106
  %v108 = vmul.f32 %v104, %v107
  %vm109 = vcmask 23552
  %110 = vst.msk [vmem:[%s3] sm:$0xff] %vm109, %v108
  // Predicated region
  $region14: #{logistic_regression_forward.1} parent=0 // pred_check
    _
  $region15: #{logistic_regression_forward.1} parent=0 // pred_check_branch
    %112 = sbr.rel (0) target = $region17
  $region16: #{logistic_regression_forward.1} parent=0 // pred_region
    _
  $region17: #{logistic_regression_forward.1} parent=0 // pred_fallthru
    _
  // Predicated region
  $region18: #{logistic_regression_forward.1} parent=0 // pred_check
    _
  $region19: #{logistic_regression_forward.1} parent=0 // pred_check_branch
    %114 = sbr.rel (0) target = $region21
  $region20: #{logistic_regression_forward.1} parent=0 // pred_region
    _
  $region21: #{logistic_regression_forward.1} parent=0 // pred_fallthru
    _

</llo_original>
